<compile_context>
chip_gen: v5e
topology: v5e:2x2
jax: 0.10.0
libtpu: 0.0.40
codegen_flags: <defaults>
</compile_context>

<pallas_src>
import functools
import math

import jax
import jax.numpy as jnp
from jax import lax
from jax.experimental import pallas as pl
from jax.experimental.pallas import tpu as pltpu


_SQRT_HALF = 1.0 / math.sqrt(2.0)


def _gelu_exact(x):
    # exact (erf-based) GELU, matching the reference PyTorch gelu()
    return x * 0.5 * (1.0 + lax.erf(x * _SQRT_HALF))


def _head_transform_kernel(xc_ref, xh_ref, wc_ref, bc_ref, wh_ref, bh_ref,
                           gamma_ref, beta_ref, out_ref, *, eps, h3,
                           approximate_gelu):
    # Projections on the MXU in the streamed dtype, f32 accumulation.
    child = jnp.dot(xc_ref[...], wc_ref[...],
                    preferred_element_type=jnp.float32)
    child = child + bc_ref[...].astype(jnp.float32)
    head = jnp.dot(xh_ref[...], wh_ref[...],
                   preferred_element_type=jnp.float32)
    head = head + bh_ref[...].astype(jnp.float32)

    if approximate_gelu:
        # tanh-approx GELU runs on the EUP slot (v7x/v6e VALU relief).
        child = jax.nn.gelu(child, approximate=True)
        head = jax.nn.gelu(head, approximate=True)
    else:
        child = _gelu_exact(child)
        head = _gelu_exact(head)
    prod = child * head

    # One-pass LayerNorm statistics of concat([child, head, prod], axis=-1):
    # accumulate sum and sum-of-squares per piece; var = E[x^2] - mean^2.
    inv_n = 1.0 / float(3 * h3)
    s = (jnp.sum(child, axis=-1, keepdims=True)
         + jnp.sum(head, axis=-1, keepdims=True)
         + jnp.sum(prod, axis=-1, keepdims=True))
    sq = (jnp.sum(child * child, axis=-1, keepdims=True)
          + jnp.sum(head * head, axis=-1, keepdims=True)
          + jnp.sum(prod * prod, axis=-1, keepdims=True))
    mean = s * inv_n
    var = jnp.maximum(sq * inv_n - mean * mean, 0.0)
    inv_std = lax.rsqrt(var + eps)

    gamma = gamma_ref[...].astype(jnp.float32)
    beta = beta_ref[...].astype(jnp.float32)

    # Emit each third directly into its output slice as x*scale + shift
    # (no lane-axis concat, no explicit (x - mean) materialization).
    for k, piece in enumerate((child, head, prod)):
        g = gamma[:, k * h3:(k + 1) * h3]          # (1, h3)
        b = beta[:, k * h3:(k + 1) * h3]           # (1, h3)
        scale = inv_std * g                        # (tm, h3)
        shift = b - mean * scale                   # (tm, h3)
        out_ref[:, k * h3:(k + 1) * h3] = (
            piece * scale + shift).astype(out_ref.dtype)


def _round_up(x, m):
    return ((x + m - 1) // m) * m


def dep_bert_prediction_head_transform(child_hidden, head_hidden,
                                       wc_t, bc, wh_t, bh,
                                       gamma, beta, eps=1e-12,
                                       block_m=1024,
                                       stream_dtype=None,
                                       approximate_gelu=False):
    """child_hidden, head_hidden: (B, S, H).  Returns (B, S, 3*(H//3)).

    stream_dtype: optionally cast activations + linear weights (e.g. to
    jnp.bfloat16) at the wrapper boundary; MXU accumulation and LayerNorm
    statistics remain f32.
    """
    B, S, H = child_hidden.shape
    H3 = wc_t.shape[1]
    Hout = 3 * H3
    M = B * S
    out_dtype = child_hidden.dtype

    xc = child_hidden.reshape(M, H)
    xh = head_hidden.reshape(M, H)
    if stream_dtype is not None:
        xc = xc.astype(stream_dtype)
        xh = xh.astype(stream_dtype)
        wc_t = wc_t.astype(stream_dtype)
        wh_t = wh_t.astype(stream_dtype)
    bc2 = bc.reshape(1, H3)
    bh2 = bh.reshape(1, H3)
    gamma2 = gamma.reshape(1, Hout)
    beta2 = beta.reshape(1, Hout)

    # Row tile: big enough to amortize the ~0.35 us per-grid-step overhead,
    # small enough that 2 streamed inputs + output (double-buffered) plus the
    # resident weights and f32 intermediates stay well inside VMEM.  Also keep
    # at least 2 grid steps (when M allows) so v7x's two TensorCores can both
    # get work on the "parallel" M axis.
    tm = min(block_m, _round_up(M, 8))
    if M > 8:
        tm = min(tm, _round_up(pl.cdiv(M, 2), 8))
    grid = (pl.cdiv(M, tm),)

    kernel = functools.partial(_head_transform_kernel, eps=float(eps), h3=H3,
                               approximate_gelu=approximate_gelu)

    row_spec = pl.BlockSpec((tm, H), lambda i: (i, 0))

    def const_spec(r, c):
        return pl.BlockSpec((r, c), lambda i: (0, 0))

    out = pl.pallas_call(
        kernel,
        out_shape=jax.ShapeDtypeStruct((M, Hout), out_dtype),
        grid=grid,
        in_specs=[
            row_spec,               # xc   (streamed over M)
            row_spec,               # xh   (streamed over M)
            const_spec(H, H3),      # wc_t (VMEM-resident)
            const_spec(1, H3),      # bc
            const_spec(H, H3),      # wh_t
            const_spec(1, H3),      # bh
            const_spec(1, Hout),    # gamma
            const_spec(1, Hout),    # beta
        ],
        out_specs=pl.BlockSpec((tm, Hout), lambda i: (i, 0)),
        compiler_params=pltpu.CompilerParams(
            dimension_semantics=("parallel",),
            # Default scoped VMEM limit (16/32 MiB) would block the large tile;
            # 48 MiB fits the tm=1024 f32 pipeline and still leaves headroom
            # under v7x's 64 MiB physical VMEM.
            vmem_limit_bytes=48 << 20),
    )(xc, xh, wc_t, bc2, wh_t, bh2, gamma2, beta2)

    return out.reshape(B, S, Hout)


def _reference(child_hidden, head_hidden, wc_t, bc, wh_t, bh, gamma, beta,
               eps=1e-12):
    child = _gelu_exact(child_hidden @ wc_t + bc)
    head = _gelu_exact(head_hidden @ wh_t + bh)
    h = jnp.concatenate([child, head, child * head], axis=-1)
    mean = jnp.mean(h, axis=-1, keepdims=True)
    var = jnp.mean(jnp.square(h - mean), axis=-1, keepdims=True)
    return (h - mean) / jnp.sqrt(var + eps) * gamma + beta


if __name__ == "__main__":
    # small config: hidden_size=48 (divisible by 3), batch=2, seq=9
    # (M = 18 deliberately not a multiple of the row tile, so the unpadded
    #  partial-last-block / masked-store path is exercised)
    B, S, H = 2, 9, 48
    H3 = H // 3
    eps = 1e-12

    key = jax.random.PRNGKey(0)
    kx1, kx2, kw1, kb1, kw2, kb2 = jax.random.split(key, 6)

    child_hidden = jax.random.normal(kx1, (B, S, H), dtype=jnp.float32)
    head_hidden = jax.random.normal(kx2, (B, S, H), dtype=jnp.float32)

    # "Linear" parameters stored pre-transposed as (H, H3)
    wc_t = jax.random.normal(kw1, (H, H3), dtype=jnp.float32) * 0.05
    bc = jax.random.normal(kb1, (H3,), dtype=jnp.float32) * 0.05
    wh_t = jax.random.normal(kw2, (H, H3), dtype=jnp.float32) * 0.05
    bh = jax.random.normal(kb2, (H3,), dtype=jnp.float32) * 0.05

    # LayerNorm parameters (BertLayerNorm init: weight=1, bias=0)
    gamma = jnp.ones((3 * H3,), dtype=jnp.float32)
    beta = jnp.zeros((3 * H3,), dtype=jnp.float32)

    ref = _reference(child_hidden, head_hidden, wc_t, bc, wh_t, bh,
                     gamma, beta, eps)

    # f32 path (exact erf GELU) -- tight tolerance.
    out = dep_bert_prediction_head_transform(
        child_hidden, head_hidden, wc_t, bc, wh_t, bh, gamma, beta, eps)
    out = jax.block_until_ready(out)
    assert out.shape == (B, S, 3 * H3)
    assert jnp.allclose(out, ref, atol=1e-4, rtol=1e-4)

    # bf16 streaming path (production config: halves HBM bytes) -- loose tol.
    out_bf16 = dep_bert_prediction_head_transform(
        child_hidden, head_hidden, wc_t, bc, wh_t, bh, gamma, beta, eps,
        stream_dtype=jnp.bfloat16)
    out_bf16 = jax.block_until_ready(out_bf16)
    assert jnp.allclose(out_bf16, ref, atol=1e-1, rtol=1e-1)

    print("KERNEL_OK")
</pallas_src>

<mosaic_0001>
module attributes {stable_mosaic.version = 11 : i64} {
  func.func @_head_transform_kernel(%arg0: i32, %arg1: memref<16x48xf32, #tpu.memory_space<vmem>>, %arg2: memref<16x48xf32, #tpu.memory_space<vmem>>, %arg3: memref<48x16xf32, #tpu.memory_space<vmem>>, %arg4: memref<1x16xf32, #tpu.memory_space<vmem>>, %arg5: memref<48x16xf32, #tpu.memory_space<vmem>>, %arg6: memref<1x16xf32, #tpu.memory_space<vmem>>, %arg7: memref<1x48xf32, #tpu.memory_space<vmem>>, %arg8: memref<1x48xf32, #tpu.memory_space<vmem>>, %arg9: memref<16x48xf32, #tpu.memory_space<vmem>>) attributes {dimension_semantics = [#tpu.dimension_semantics<parallel>], iteration_bounds = array<i64: 2>, scalar_prefetch = 0 : i64, scratch_operands = 0 : i64, tpu.core_type = #tpu.core_type<tc>, window_params = [{transform_indices = @transform_0, window_bounds = array<i64: 16, 48>}, {transform_indices = @transform_1, window_bounds = array<i64: 16, 48>}, {pipeline_mode = #tpu.pipeline_mode<synchronous>, transform_indices = @transform_2, window_bounds = array<i64: 48, 16>}, {pipeline_mode = #tpu.pipeline_mode<synchronous>, transform_indices = @transform_3, window_bounds = array<i64: 1, 16>}, {pipeline_mode = #tpu.pipeline_mode<synchronous>, transform_indices = @transform_4, window_bounds = array<i64: 48, 16>}, {pipeline_mode = #tpu.pipeline_mode<synchronous>, transform_indices = @transform_5, window_bounds = array<i64: 1, 16>}, {pipeline_mode = #tpu.pipeline_mode<synchronous>, transform_indices = @transform_6, window_bounds = array<i64: 1, 48>}, {pipeline_mode = #tpu.pipeline_mode<synchronous>, transform_indices = @transform_7, window_bounds = array<i64: 1, 48>}, {transform_indices = @transform_8, window_bounds = array<i64: 16, 48>}]} {
    %c0 = arith.constant 0 : index
    %c0_0 = arith.constant 0 : index
    %0 = vector.load %arg1[%c0, %c0_0] : memref<16x48xf32, #tpu.memory_space<vmem>>, vector<16x48xf32>
    %c0_1 = arith.constant 0 : index
    %c0_2 = arith.constant 0 : index
    %1 = vector.load %arg3[%c0_1, %c0_2] : memref<48x16xf32, #tpu.memory_space<vmem>>, vector<48x16xf32>
    %cst = arith.constant dense<0.000000e+00> : vector<16x16xf32>
    %2 = tpu.matmul %0, %1, %cst {dimension_numbers = #tpu.dot_dimension_numbers<[1], [0], [0], [1], [0, 0, 1, 1], [], []>} : vector<16x48xf32>, vector<48x16xf32>, vector<16x16xf32> -> vector<16x16xf32>
    %c0_3 = arith.constant 0 : index
    %c0_4 = arith.constant 0 : index
    %3 = vector.load %arg4[%c0_3, %c0_4] : memref<1x16xf32, #tpu.memory_space<vmem>>, vector<1x16xf32>
    %4 = vector.broadcast %3 : vector<1x16xf32> to vector<16x16xf32>
    %5 = arith.addf %2, %4 : vector<16x16xf32>
    %c0_5 = arith.constant 0 : index
    %c0_6 = arith.constant 0 : index
    %6 = vector.load %arg2[%c0_5, %c0_6] : memref<16x48xf32, #tpu.memory_space<vmem>>, vector<16x48xf32>
    %c0_7 = arith.constant 0 : index
    %c0_8 = arith.constant 0 : index
    %7 = vector.load %arg5[%c0_7, %c0_8] : memref<48x16xf32, #tpu.memory_space<vmem>>, vector<48x16xf32>
    %cst_9 = arith.constant dense<0.000000e+00> : vector<16x16xf32>
    %8 = tpu.matmul %6, %7, %cst_9 {dimension_numbers = #tpu.dot_dimension_numbers<[1], [0], [0], [1], [0, 0, 1, 1], [], []>} : vector<16x48xf32>, vector<48x16xf32>, vector<16x16xf32> -> vector<16x16xf32>
    %c0_10 = arith.constant 0 : index
    %c0_11 = arith.constant 0 : index
    %9 = vector.load %arg6[%c0_10, %c0_11] : memref<1x16xf32, #tpu.memory_space<vmem>>, vector<1x16xf32>
    %10 = vector.broadcast %9 : vector<1x16xf32> to vector<16x16xf32>
    %11 = arith.addf %8, %10 : vector<16x16xf32>
    %cst_12 = arith.constant 5.000000e-01 : f32
    %12 = vector.broadcast %cst_12 : f32 to vector<16x16xf32>
    %13 = arith.mulf %5, %12 : vector<16x16xf32>
    %cst_13 = arith.constant 0.707106769 : f32
    %14 = vector.broadcast %cst_13 : f32 to vector<16x16xf32>
    %15 = arith.mulf %5, %14 : vector<16x16xf32>
    %16 = math.erf %15 : vector<16x16xf32>
    %cst_14 = arith.constant 1.000000e+00 : f32
    %17 = vector.broadcast %cst_14 : f32 to vector<16x16xf32>
    %18 = arith.addf %17, %16 : vector<16x16xf32>
    %19 = arith.mulf %13, %18 : vector<16x16xf32>
    %cst_15 = arith.constant 5.000000e-01 : f32
    %20 = vector.broadcast %cst_15 : f32 to vector<16x16xf32>
    %21 = arith.mulf %11, %20 : vector<16x16xf32>
    %cst_16 = arith.constant 0.707106769 : f32
    %22 = vector.broadcast %cst_16 : f32 to vector<16x16xf32>
    %23 = arith.mulf %11, %22 : vector<16x16xf32>
    %24 = math.erf %23 : vector<16x16xf32>
    %cst_17 = arith.constant 1.000000e+00 : f32
    %25 = vector.broadcast %cst_17 : f32 to vector<16x16xf32>
    %26 = arith.addf %25, %24 : vector<16x16xf32>
    %27 = arith.mulf %21, %26 : vector<16x16xf32>
    %28 = arith.mulf %19, %27 : vector<16x16xf32>
    %cst_18 = arith.constant dense<0.000000e+00> : vector<16xf32>
    %29 = vector.multi_reduction <add>, %19, %cst_18 [1] : vector<16x16xf32> to vector<16xf32>
    %30 = vector.shape_cast %29 : vector<16xf32> to vector<16x1xf32>
    %cst_19 = arith.constant dense<0.000000e+00> : vector<16xf32>
    %31 = vector.multi_reduction <add>, %27, %cst_19 [1] : vector<16x16xf32> to vector<16xf32>
    %32 = vector.shape_cast %31 : vector<16xf32> to vector<16x1xf32>
    %33 = arith.addf %30, %32 : vector<16x1xf32>
    %cst_20 = arith.constant dense<0.000000e+00> : vector<16xf32>
    %34 = vector.multi_reduction <add>, %28, %cst_20 [1] : vector<16x16xf32> to vector<16xf32>
    %35 = vector.shape_cast %34 : vector<16xf32> to vector<16x1xf32>
    %36 = arith.addf %33, %35 : vector<16x1xf32>
    %37 = arith.mulf %19, %19 : vector<16x16xf32>
    %cst_21 = arith.constant dense<0.000000e+00> : vector<16xf32>
    %38 = vector.multi_reduction <add>, %37, %cst_21 [1] : vector<16x16xf32> to vector<16xf32>
    %39 = vector.shape_cast %38 : vector<16xf32> to vector<16x1xf32>
    %40 = arith.mulf %27, %27 : vector<16x16xf32>
    %cst_22 = arith.constant dense<0.000000e+00> : vector<16xf32>
    %41 = vector.multi_reduction <add>, %40, %cst_22 [1] : vector<16x16xf32> to vector<16xf32>
    %42 = vector.shape_cast %41 : vector<16xf32> to vector<16x1xf32>
    %43 = arith.addf %39, %42 : vector<16x1xf32>
    %44 = arith.mulf %28, %28 : vector<16x16xf32>
    %cst_23 = arith.constant dense<0.000000e+00> : vector<16xf32>
    %45 = vector.multi_reduction <add>, %44, %cst_23 [1] : vector<16x16xf32> to vector<16xf32>
    %46 = vector.shape_cast %45 : vector<16xf32> to vector<16x1xf32>
    %47 = arith.addf %43, %46 : vector<16x1xf32>
    %cst_24 = arith.constant 0.020833334 : f32
    %48 = vector.broadcast %cst_24 : f32 to vector<16x1xf32>
    %49 = arith.mulf %36, %48 : vector<16x1xf32>
    %cst_25 = arith.constant 0.020833334 : f32
    %50 = vector.broadcast %cst_25 : f32 to vector<16x1xf32>
    %51 = arith.mulf %47, %50 : vector<16x1xf32>
    %52 = arith.mulf %49, %49 : vector<16x1xf32>
    %53 = arith.subf %51, %52 : vector<16x1xf32>
    %cst_26 = arith.constant 0.000000e+00 : f32
    %54 = vector.broadcast %cst_26 : f32 to vector<16x1xf32>
    %55 = arith.maximumf %53, %54 : vector<16x1xf32>
    %cst_27 = arith.constant 9.99999996E-13 : f32
    %56 = vector.broadcast %cst_27 : f32 to vector<16x1xf32>
    %57 = arith.addf %55, %56 : vector<16x1xf32>
    %58 = math.rsqrt %57 : vector<16x1xf32>
    %c0_28 = arith.constant 0 : index
    %c0_29 = arith.constant 0 : index
    %59 = vector.load %arg7[%c0_28, %c0_29] : memref<1x48xf32, #tpu.memory_space<vmem>>, vector<1x48xf32>
    %c0_30 = arith.constant 0 : index
    %c0_31 = arith.constant 0 : index
    %60 = vector.load %arg8[%c0_30, %c0_31] : memref<1x48xf32, #tpu.memory_space<vmem>>, vector<1x48xf32>
    %61 = vector.extract_strided_slice %59 {offsets = [0, 0], sizes = [1, 16], strides = [1, 1]} : vector<1x48xf32> to vector<1x16xf32>
    %62 = vector.extract_strided_slice %60 {offsets = [0, 0], sizes = [1, 16], strides = [1, 1]} : vector<1x48xf32> to vector<1x16xf32>
    %63 = vector.broadcast %58 : vector<16x1xf32> to vector<16x16xf32>
    %64 = vector.broadcast %61 : vector<1x16xf32> to vector<16x16xf32>
    %65 = arith.mulf %63, %64 : vector<16x16xf32>
    %66 = vector.broadcast %49 : vector<16x1xf32> to vector<16x16xf32>
    %67 = arith.mulf %66, %65 : vector<16x16xf32>
    %68 = vector.broadcast %62 : vector<1x16xf32> to vector<16x16xf32>
    %69 = arith.subf %68, %67 : vector<16x16xf32>
    %70 = arith.mulf %19, %65 : vector<16x16xf32>
    %71 = arith.addf %70, %69 : vector<16x16xf32>
    %c0_32 = arith.constant 0 : index
    %c0_33 = arith.constant 0 : index
    %72 = vector.load %arg9[%c0_32, %c0_33] : memref<16x48xf32, #tpu.memory_space<vmem>>, vector<16x16xf32>
    tpu.vector_store %arg9[%c0_32, %c0_33], %71 {strides = array<i32>} : memref<16x48xf32, #tpu.memory_space<vmem>>, vector<16x16xf32>,
    %73 = vector.extract_strided_slice %59 {offsets = [0, 16], sizes = [1, 16], strides = [1, 1]} : vector<1x48xf32> to vector<1x16xf32>
    %74 = vector.extract_strided_slice %60 {offsets = [0, 16], sizes = [1, 16], strides = [1, 1]} : vector<1x48xf32> to vector<1x16xf32>
    %75 = vector.broadcast %58 : vector<16x1xf32> to vector<16x16xf32>
    %76 = vector.broadcast %73 : vector<1x16xf32> to vector<16x16xf32>
    %77 = arith.mulf %75, %76 : vector<16x16xf32>
    %78 = vector.broadcast %49 : vector<16x1xf32> to vector<16x16xf32>
    %79 = arith.mulf %78, %77 : vector<16x16xf32>
    %80 = vector.broadcast %74 : vector<1x16xf32> to vector<16x16xf32>
    %81 = arith.subf %80, %79 : vector<16x16xf32>
    %82 = arith.mulf %27, %77 : vector<16x16xf32>
    %83 = arith.addf %82, %81 : vector<16x16xf32>
    %c0_34 = arith.constant 0 : index
    %c16 = arith.constant 16 : index
    %84 = vector.load %arg9[%c0_34, %c16] : memref<16x48xf32, #tpu.memory_space<vmem>>, vector<16x16xf32>
    tpu.vector_store %arg9[%c0_34, %c16], %83 {strides = array<i32>} : memref<16x48xf32, #tpu.memory_space<vmem>>, vector<16x16xf32>,
    %85 = vector.extract_strided_slice %59 {offsets = [0, 32], sizes = [1, 16], strides = [1, 1]} : vector<1x48xf32> to vector<1x16xf32>
    %86 = vector.extract_strided_slice %60 {offsets = [0, 32], sizes = [1, 16], strides = [1, 1]} : vector<1x48xf32> to vector<1x16xf32>
    %87 = vector.broadcast %58 : vector<16x1xf32> to vector<16x16xf32>
    %88 = vector.broadcast %85 : vector<1x16xf32> to vector<16x16xf32>
    %89 = arith.mulf %87, %88 : vector<16x16xf32>
    %90 = vector.broadcast %49 : vector<16x1xf32> to vector<16x16xf32>
    %91 = arith.mulf %90, %89 : vector<16x16xf32>
    %92 = vector.broadcast %86 : vector<1x16xf32> to vector<16x16xf32>
    %93 = arith.subf %92, %91 : vector<16x16xf32>
    %94 = arith.mulf %28, %89 : vector<16x16xf32>
    %95 = arith.addf %94, %93 : vector<16x16xf32>
    %c0_35 = arith.constant 0 : index
    %c32 = arith.constant 32 : index
    %96 = vector.load %arg9[%c0_35, %c32] : memref<16x48xf32, #tpu.memory_space<vmem>>, vector<16x16xf32>
    tpu.vector_store %arg9[%c0_35, %c32], %95 {strides = array<i32>} : memref<16x48xf32, #tpu.memory_space<vmem>>, vector<16x16xf32>,
    return
  }
  func.func @transform_0(%arg0: i32) -> (i32, i32) {
    %c0_i32 = arith.constant 0 : i32
    %c0_i32_0 = arith.constant 0 : i32
    return %arg0, %c0_i32 : i32, i32
  }
  func.func @transform_1(%arg0: i32) -> (i32, i32) {
    %c0_i32 = arith.constant 0 : i32
    %c0_i32_0 = arith.constant 0 : i32
    return %arg0, %c0_i32 : i32, i32
  }
  func.func @transform_2(%arg0: i32) -> (i32, i32) {
    %c0_i32 = arith.constant 0 : i32
    %c0_i32_0 = arith.constant 0 : i32
    %c0_i32_1 = arith.constant 0 : i32
    return %c0_i32, %c0_i32_0 : i32, i32
  }
  func.func @transform_3(%arg0: i32) -> (i32, i32) {
    %c0_i32 = arith.constant 0 : i32
    %c0_i32_0 = arith.constant 0 : i32
    %c0_i32_1 = arith.constant 0 : i32
    return %c0_i32, %c0_i32_0 : i32, i32
  }
  func.func @transform_4(%arg0: i32) -> (i32, i32) {
    %c0_i32 = arith.constant 0 : i32
    %c0_i32_0 = arith.constant 0 : i32
    %c0_i32_1 = arith.constant 0 : i32
    return %c0_i32, %c0_i32_0 : i32, i32
  }
  func.func @transform_5(%arg0: i32) -> (i32, i32) {
    %c0_i32 = arith.constant 0 : i32
    %c0_i32_0 = arith.constant 0 : i32
    %c0_i32_1 = arith.constant 0 : i32
    return %c0_i32, %c0_i32_0 : i32, i32
  }
  func.func @transform_6(%arg0: i32) -> (i32, i32) {
    %c0_i32 = arith.constant 0 : i32
    %c0_i32_0 = arith.constant 0 : i32
    %c0_i32_1 = arith.constant 0 : i32
    return %c0_i32, %c0_i32_0 : i32, i32
  }
  func.func @transform_7(%arg0: i32) -> (i32, i32) {
    %c0_i32 = arith.constant 0 : i32
    %c0_i32_0 = arith.constant 0 : i32
    %c0_i32_1 = arith.constant 0 : i32
    return %c0_i32, %c0_i32_0 : i32, i32
  }
  func.func @transform_8(%arg0: i32) -> (i32, i32) {
    %c0_i32 = arith.constant 0 : i32
    %c0_i32_0 = arith.constant 0 : i32
    return %arg0, %c0_i32 : i32, i32
  }
}

</mosaic_0001>

<llo_original>
// kernel: tpu_custom_call.1
$region0: #{tpu_custom_call.1}
  #allocation0 [shape = 'u32[]', space=smem, size = 0x4, offset = 0x4, fixed_abs, tag = 'smem constant byte address 0x4 - core index']
  #allocation1 [shape = 'u32[72,128]{1,0:T(1,128)}', space=vmem, size = 0x9000, scoped, tag = 'internal scratch']
  %s0 = inlined_call_operand.vmem [shape: f32[18,48], index: 0, kind: input, shape index: {}]
  %s1 = inlined_call_operand.vmem [shape: f32[18,48], index: 1, kind: input, shape index: {}]
  %s2 = inlined_call_operand.vmem [shape: f32[48,16], index: 2, kind: input, shape index: {}]
  %s3 = inlined_call_operand.vmem [shape: f32[1,16], index: 3, kind: input, shape index: {}]
  %s4 = inlined_call_operand.vmem [shape: f32[48,16], index: 4, kind: input, shape index: {}]
  %s5 = inlined_call_operand.vmem [shape: f32[1,16], index: 5, kind: input, shape index: {}]
  %s6 = inlined_call_operand.vmem [shape: f32[1,48], index: 6, kind: input, shape index: {}]
  %s7 = inlined_call_operand.vmem [shape: f32[1,48], index: 7, kind: input, shape index: {}]
  %s8 = inlined_call_operand.hbm [shape: f32[18,48], index: 8, kind: output, shape index: {}]
  %s9 = sld [smem:[#allocation0]]
  $region65: #{tpu_custom_call.1} parent=0
    _
  %s11 = ssub.s32 1, %s9
  %s12 = scalar_select 0, %s11, %s9
  $region1: #{tpu_custom_call.1} parent=0
    #allocation2 [shape = 'u8[16384]{0}', space=vmem, size = 0x4000, scoped, tag = 'output window, operand 0']
    #allocation3 [shape = 's32[2]{0}', space=sflag, size = 0x8, scoped, tag = 'scoped memory for tpu_custom_call.1']
    %13 = vsyncpa [#allocation3], 0
    %s14 = scalar_lea.sflag [#allocation3], 1
    %15 = vsyncpa %s14, 0
    loop: start=0, step=1, limit=4
    $region2: #{tpu_custom_call.1} parent=1 // loop_pre_header
      _
    $region3: #{tpu_custom_call.1} parent=1 // loop_header
      %s17 = sphi 0, %s21
      %p18 = scmp.ge.s32.totalorder %s17, 4
      %s27 = sphi 0, %s29
      %s30 = sphi 0, %s27
      %s31 = sphi 0, %s30
      %s47 = sphi 0, %s31
      %s53 = sphi 0, %s55
      %s56 = sphi 0, %s53
      %s57 = sphi 0, %s56
      %s73 = sphi 0, %s57
      %s77 = sphi 0, %s77
      %s79 = sphi 0, %s77
      %s80 = sphi 0, %s79
      %s94 = sphi 0, %s80
      %s98 = sphi 0, %s98
      %s100 = sphi 0, %s98
      %s101 = sphi 0, %s100
      %s115 = sphi 0, %s101
      %s119 = sphi 0, %s119
      %s121 = sphi 0, %s119
      %s122 = sphi 0, %s121
      %s136 = sphi 0, %s122
      %s140 = sphi 0, %s140
      %s142 = sphi 0, %s140
      %s143 = sphi 0, %s142
      %s157 = sphi 0, %s143
      %s161 = sphi 0, %s161
      %s163 = sphi 0, %s161
      %s164 = sphi 0, %s163
      %s178 = sphi 0, %s164
      %s182 = sphi 0, %s182
      %s184 = sphi 0, %s182
      %s185 = sphi 0, %s184
      %s199 = sphi 0, %s185
      %s205 = sphi 0, %s207
      %s208 = sphi 0, %s205
      %s209 = sphi 0, %s208
      %s225 = sphi 0, %s209
    $region4: #{tpu_custom_call.1} parent=1 // loop_header_branch
      %20 = sbr.rel (%p18) target = $region8
    $region5: #{tpu_custom_call.1} parent=1 // loop_body
      %s22 = ssub.s32 %s17, 1
      %s23 = ssub.s32 %s17, 2
      %s24 = sadd.s32 %s17, 1
      %s25 = ssub.s32 %s17, %s24
      %p26 = scmp.eq.s32.totalorder %s25, 0
      %s28 = sadd.s32 %s27, 1
      %s29 = scalar_select %p26, %s27, %s28
      %p32 = pneg %p26
      %p33 = scmp.eq.s32.totalorder %s17, 1
      %p34 = por %p32, %p33
      %p35 = scmp.ne.s32.totalorder %s27, %s30
      %p36 = scmp.eq.s32.totalorder %s17, 0
      %p37 = por %p35, %p36
      %p38 = scmp.ne.s32.totalorder %s27, %s30
      %p39 = scmp.eq.s32.totalorder %s22, 1
      %p40 = por %p38, %p39
      %p41 = scmp.ne.s32.totalorder %s30, %s31
      %p42 = scmp.eq.s32.totalorder %s22, 0
      %p43 = por %p41, %p42
      %p44 = scmp.ne.s32.totalorder %s30, %s31
      %p45 = scmp.eq.s32.totalorder %s23, 1
      %p46 = por %p44, %p45
      %p48 = scmp.ne.s32.totalorder %s31, %s47
      %p49 = scmp.eq.s32.totalorder %s23, 0
      %p50 = por %p48, %p49
      %s51 = ssub.s32 %s17, %s24
      %p52 = scmp.eq.s32.totalorder %s51, 0
      %s54 = sadd.s32 %s53, 1
      %s55 = scalar_select %p52, %s53, %s54
      %p58 = pneg %p52
      %p59 = scmp.eq.s32.totalorder %s17, 1
      %p60 = por %p58, %p59
      %p61 = scmp.ne.s32.totalorder %s53, %s56
      %p62 = scmp.eq.s32.totalorder %s17, 0
      %p63 = por %p61, %p62
      %p64 = scmp.ne.s32.totalorder %s53, %s56
      %p65 = scmp.eq.s32.totalorder %s22, 1
      %p66 = por %p64, %p65
      %p67 = scmp.ne.s32.totalorder %s56, %s57
      %p68 = scmp.eq.s32.totalorder %s22, 0
      %p69 = por %p67, %p68
      %p70 = scmp.ne.s32.totalorder %s56, %s57
      %p71 = scmp.eq.s32.totalorder %s23, 1
      %p72 = por %p70, %p71
      %p74 = scmp.ne.s32.totalorder %s57, %s73
      %p75 = scmp.eq.s32.totalorder %s23, 0
      %p76 = por %p74, %p75
      %s78 = sadd.s32 %s77, 1
      %p81 = scmp.eq.s32.totalorder %s17, 1
      %p82 = scmp.ne.s32.totalorder %s77, %s79
      %p83 = scmp.eq.s32.totalorder %s17, 0
      %p84 = por %p82, %p83
      %p85 = scmp.ne.s32.totalorder %s77, %s79
      %p86 = scmp.eq.s32.totalorder %s22, 1
      %p87 = por %p85, %p86
      %p88 = scmp.ne.s32.totalorder %s79, %s80
      %p89 = scmp.eq.s32.totalorder %s22, 0
      %p90 = por %p88, %p89
      %p91 = scmp.ne.s32.totalorder %s79, %s80
      %p92 = scmp.eq.s32.totalorder %s23, 1
      %p93 = por %p91, %p92
      %p95 = scmp.ne.s32.totalorder %s80, %s94
      %p96 = scmp.eq.s32.totalorder %s23, 0
      %p97 = por %p95, %p96
      %s99 = sadd.s32 %s98, 1
      %p102 = scmp.eq.s32.totalorder %s17, 1
      %p103 = scmp.ne.s32.totalorder %s98, %s100
      %p104 = scmp.eq.s32.totalorder %s17, 0
      %p105 = por %p103, %p104
      %p106 = scmp.ne.s32.totalorder %s98, %s100
      %p107 = scmp.eq.s32.totalorder %s22, 1
      %p108 = por %p106, %p107
      %p109 = scmp.ne.s32.totalorder %s100, %s101
      %p110 = scmp.eq.s32.totalorder %s22, 0
      %p111 = por %p109, %p110
      %p112 = scmp.ne.s32.totalorder %s100, %s101
      %p113 = scmp.eq.s32.totalorder %s23, 1
      %p114 = por %p112, %p113
      %p116 = scmp.ne.s32.totalorder %s101, %s115
      %p117 = scmp.eq.s32.totalorder %s23, 0
      %p118 = por %p116, %p117
      %s120 = sadd.s32 %s119, 1
      %p123 = scmp.eq.s32.totalorder %s17, 1
      %p124 = scmp.ne.s32.totalorder %s119, %s121
      %p125 = scmp.eq.s32.totalorder %s17, 0
      %p126 = por %p124, %p125
      %p127 = scmp.ne.s32.totalorder %s119, %s121
      %p128 = scmp.eq.s32.totalorder %s22, 1
      %p129 = por %p127, %p128
      %p130 = scmp.ne.s32.totalorder %s121, %s122
      %p131 = scmp.eq.s32.totalorder %s22, 0
      %p132 = por %p130, %p131
      %p133 = scmp.ne.s32.totalorder %s121, %s122
      %p134 = scmp.eq.s32.totalorder %s23, 1
      %p135 = por %p133, %p134
      %p137 = scmp.ne.s32.totalorder %s122, %s136
      %p138 = scmp.eq.s32.totalorder %s23, 0
      %p139 = por %p137, %p138
      %s141 = sadd.s32 %s140, 1
      %p144 = scmp.eq.s32.totalorder %s17, 1
      %p145 = scmp.ne.s32.totalorder %s140, %s142
      %p146 = scmp.eq.s32.totalorder %s17, 0
      %p147 = por %p145, %p146
      %p148 = scmp.ne.s32.totalorder %s140, %s142
      %p149 = scmp.eq.s32.totalorder %s22, 1
      %p150 = por %p148, %p149
      %p151 = scmp.ne.s32.totalorder %s142, %s143
      %p152 = scmp.eq.s32.totalorder %s22, 0
      %p153 = por %p151, %p152
      %p154 = scmp.ne.s32.totalorder %s142, %s143
      %p155 = scmp.eq.s32.totalorder %s23, 1
      %p156 = por %p154, %p155
      %p158 = scmp.ne.s32.totalorder %s143, %s157
      %p159 = scmp.eq.s32.totalorder %s23, 0
      %p160 = por %p158, %p159
      %s162 = sadd.s32 %s161, 1
      %p165 = scmp.eq.s32.totalorder %s17, 1
      %p166 = scmp.ne.s32.totalorder %s161, %s163
      %p167 = scmp.eq.s32.totalorder %s17, 0
      %p168 = por %p166, %p167
      %p169 = scmp.ne.s32.totalorder %s161, %s163
      %p170 = scmp.eq.s32.totalorder %s22, 1
      %p171 = por %p169, %p170
      %p172 = scmp.ne.s32.totalorder %s163, %s164
      %p173 = scmp.eq.s32.totalorder %s22, 0
      %p174 = por %p172, %p173
      %p175 = scmp.ne.s32.totalorder %s163, %s164
      %p176 = scmp.eq.s32.totalorder %s23, 1
      %p177 = por %p175, %p176
      %p179 = scmp.ne.s32.totalorder %s164, %s178
      %p180 = scmp.eq.s32.totalorder %s23, 0
      %p181 = por %p179, %p180
      %s183 = sadd.s32 %s182, 1
      %p186 = scmp.eq.s32.totalorder %s17, 1
      %p187 = scmp.ne.s32.totalorder %s182, %s184
      %p188 = scmp.eq.s32.totalorder %s17, 0
      %p189 = por %p187, %p188
      %p190 = scmp.ne.s32.totalorder %s182, %s184
      %p191 = scmp.eq.s32.totalorder %s22, 1
      %p192 = por %p190, %p191
      %p193 = scmp.ne.s32.totalorder %s184, %s185
      %p194 = scmp.eq.s32.totalorder %s22, 0
      %p195 = por %p193, %p194
      %p196 = scmp.ne.s32.totalorder %s184, %s185
      %p197 = scmp.eq.s32.totalorder %s23, 1
      %p198 = por %p196, %p197
      %p200 = scmp.ne.s32.totalorder %s185, %s199
      %p201 = scmp.eq.s32.totalorder %s23, 0
      %p202 = por %p200, %p201
      %s203 = ssub.s32 %s17, %s24
      %p204 = scmp.eq.s32.totalorder %s203, 0
      %s206 = sadd.s32 %s205, 1
      %s207 = scalar_select %p204, %s205, %s206
      %p210 = pneg %p204
      %p211 = scmp.eq.s32.totalorder %s17, 1
      %p212 = por %p210, %p211
      %p213 = scmp.ne.s32.totalorder %s205, %s208
      %p214 = scmp.eq.s32.totalorder %s17, 0
      %p215 = por %p213, %p214
      %p216 = scmp.ne.s32.totalorder %s205, %s208
      %p217 = scmp.eq.s32.totalorder %s22, 1
      %p218 = por %p216, %p217
      %p219 = scmp.ne.s32.totalorder %s208, %s209
      %p220 = scmp.eq.s32.totalorder %s22, 0
      %p221 = por %p219, %p220
      %p222 = scmp.ne.s32.totalorder %s208, %s209
      %p223 = scmp.eq.s32.totalorder %s23, 1
      %p224 = por %p222, %p223
      %p226 = scmp.ne.s32.totalorder %s209, %s225
      %p227 = scmp.eq.s32.totalorder %s23, 0
      %p228 = por %p226, %p227
      %p229 = scmp.le.s32.totalorder 1, %s17
      %p230 = scmp.lt.s32.totalorder %s17, 3
      %p231 = pnand %p229, %p230
      %p232 = pneg %p231
      // Predicated region
      $region9: #{tpu_custom_call.1} parent=5 // pred_check
        _
      $region10: #{tpu_custom_call.1} parent=5 // pred_check_branch
        %234 = sbr.rel (%p231) target = $region12
      $region11: #{tpu_custom_call.1} parent=5 // pred_region
        %s235 = ssub.s32 %s17, 1
        // Predicated region
        $region13: #{tpu_custom_call.1} parent=11 // pred_check
          %p236 = pneg %p90
        $region14: #{tpu_custom_call.1} parent=11 // pred_check_branch
          %238 = sbr.rel (%p236) target = $region16
        $region15: #{tpu_custom_call.1} parent=11 // pred_region
          _
        $region16: #{tpu_custom_call.1} parent=11 // pred_fallthru
          _
        // Predicated region
        $region17: #{tpu_custom_call.1} parent=11 // pred_check
          %p239 = pneg %p111
        $region18: #{tpu_custom_call.1} parent=11 // pred_check_branch
          %241 = sbr.rel (%p239) target = $region20
        $region19: #{tpu_custom_call.1} parent=11 // pred_region
          _
        $region20: #{tpu_custom_call.1} parent=11 // pred_fallthru
          _
        // Predicated region
        $region21: #{tpu_custom_call.1} parent=11 // pred_check
          %p242 = pneg %p132
        $region22: #{tpu_custom_call.1} parent=11 // pred_check_branch
          %244 = sbr.rel (%p242) target = $region24
        $region23: #{tpu_custom_call.1} parent=11 // pred_region
          _
        $region24: #{tpu_custom_call.1} parent=11 // pred_fallthru
          _
        // Predicated region
        $region25: #{tpu_custom_call.1} parent=11 // pred_check
          %p245 = pneg %p153
        $region26: #{tpu_custom_call.1} parent=11 // pred_check_branch
          %247 = sbr.rel (%p245) target = $region28
        $region27: #{tpu_custom_call.1} parent=11 // pred_region
          _
        $region28: #{tpu_custom_call.1} parent=11 // pred_fallthru
          _
        // Predicated region
        $region29: #{tpu_custom_call.1} parent=11 // pred_check
          %p248 = pneg %p174
        $region30: #{tpu_custom_call.1} parent=11 // pred_check_branch
          %250 = sbr.rel (%p248) target = $region32
        $region31: #{tpu_custom_call.1} parent=11 // pred_region
          _
        $region32: #{tpu_custom_call.1} parent=11 // pred_fallthru
          _
        // Predicated region
        $region33: #{tpu_custom_call.1} parent=11 // pred_check
          %p251 = pneg %p195
        $region34: #{tpu_custom_call.1} parent=11 // pred_check_branch
          %253 = sbr.rel (%p251) target = $region36
        $region35: #{tpu_custom_call.1} parent=11 // pred_region
          _
        $region36: #{tpu_custom_call.1} parent=11 // pred_fallthru
          _
      $region12: #{tpu_custom_call.1} parent=5 // pred_fallthru
        _
      %p254 = scmp.lt.s32.totalorder %s17, 2
      // Predicated region
      $region37: #{tpu_custom_call.1} parent=5 // pred_check
        %p255 = pneg %p254
      $region38: #{tpu_custom_call.1} parent=5 // pred_check_branch
        %257 = sbr.rel (%p255) target = $region40
      $region39: #{tpu_custom_call.1} parent=5 // pred_region
        // Predicated region
        $region41: #{tpu_custom_call.1} parent=39 // pred_check
          %p258 = pneg %p37
        $region42: #{tpu_custom_call.1} parent=39 // pred_check_branch
          %260 = sbr.rel (%p258) target = $region44
        $region43: #{tpu_custom_call.1} parent=39 // pred_region
          %s261 = smul.u32 2, %s17
          %s262 = ssub.s32 3, %s261
          %p263 = scmp.lt.s32.totalorder %s262, 2
          %s264 = scalar_select %p263, %s262, 2
          %s265 = smul.u32 8, %s264
          %p266 = scmp.lt.s32.totalorder %s261, 2
          %s267 = scalar_select %p266, %s261, 2
          %s268 = smul.addr %s267, 8
          %s269 = scalar_lea.vmem %s0, %s268
          %s270 = smul.u32 2, %s17
          %s271 = ssub.s32 3, %s270
          %p272 = scmp.lt.s32.totalorder %s271, 2
          %s273 = scalar_select %p272, %s271, 2
          %s274 = smul.u32 8, %s273
        $region44: #{tpu_custom_call.1} parent=39 // pred_fallthru
          _
        // Predicated region
        $region45: #{tpu_custom_call.1} parent=39 // pred_check
          %p275 = pneg %p63
        $region46: #{tpu_custom_call.1} parent=39 // pred_check_branch
          %277 = sbr.rel (%p275) target = $region48
        $region47: #{tpu_custom_call.1} parent=39 // pred_region
          %s278 = smul.u32 2, %s17
          %s279 = ssub.s32 3, %s278
          %p280 = scmp.lt.s32.totalorder %s279, 2
          %s281 = scalar_select %p280, %s279, 2
          %s282 = smul.u32 8, %s281
          %p283 = scmp.lt.s32.totalorder %s278, 2
          %s284 = scalar_select %p283, %s278, 2
          %s285 = smul.addr %s284, 8
          %s286 = scalar_lea.vmem %s1, %s285
          %s287 = smul.u32 2, %s17
          %s288 = ssub.s32 3, %s287
          %p289 = scmp.lt.s32.totalorder %s288, 2
          %s290 = scalar_select %p289, %s288, 2
          %s291 = smul.u32 8, %s290
        $region48: #{tpu_custom_call.1} parent=39 // pred_fallthru
          _
      $region40: #{tpu_custom_call.1} parent=5 // pred_fallthru
        _
      %p292 = scmp.le.s32.totalorder 1, %s17
      %p293 = scmp.lt.s32.totalorder %s17, 3
      %p294 = pnand %p292, %p293
      %p295 = pneg %p294
      // Predicated region
      $region49: #{tpu_custom_call.1} parent=5 // pred_check
        _
      $region50: #{tpu_custom_call.1} parent=5 // pred_check_branch
        %297 = sbr.rel (%p294) target = $region52
      $region51: #{tpu_custom_call.1} parent=5 // pred_region
        %s298 = ssub.s32 %s17, 1
        %s299 = smul.u32 2, %s22
        %s300 = ssub.s32 3, %s299
        %p301 = scmp.lt.s32.totalorder %s300, 2
        %s302 = scalar_select %p301, %s300, 2
        %s303 = smul.u32 8, %s302
        %p304 = scmp.lt.s32.totalorder %s299, 2
        %s305 = scalar_select %p304, %s299, 2
        %s306 = smul.addr %s305, 8
        %s307 = scalar_lea.vmem %s0, %s306
        %p308 = pneg %p43
        %p309 = pneg %p40
        %s310 = smul.u32 2, %s22
        %s311 = ssub.s32 3, %s310
        %p312 = scmp.lt.s32.totalorder %s311, 2
        %s313 = scalar_select %p312, %s311, 2
        %s314 = smul.u32 8, %s313
        %p315 = scmp.lt.s32.totalorder %s310, 2
        %s316 = scalar_select %p315, %s310, 2
        %s317 = smul.addr %s316, 8
        %s318 = scalar_lea.vmem %s1, %s317
        %p319 = pneg %p69
        %p320 = pneg %p66
        %p321 = pneg %p90
        %p322 = pneg %p87
        %p323 = pneg %p111
        %p324 = pneg %p108
        %p325 = pneg %p132
        %p326 = pneg %p129
        %p327 = pneg %p153
        %p328 = pneg %p150
        %p329 = pneg %p174
        %p330 = pneg %p171
        %p331 = pneg %p195
        %p332 = pneg %p192
        %p333 = pneg %p221
        %p334 = pneg %p218
        %s335 = sand.u32 %s208, 1
        %s336 = scalar_lea.sflag [#allocation3], %s335
        %s337 = sand.u32 %s208, 1
        %s338 = smul.addr %s337, 16
        %s339 = scalar_lea.vmem [#allocation2], %s338
        %s340 = smul.u32 2, %s22
        %s341 = ssub.s32 3, %s340
        %p342 = scmp.lt.s32.totalorder %s341, 2
        %s343 = scalar_select %p342, %s341, 2
        %s344 = smul.u32 8, %s343
        %p345 = scmp.lt.s32.totalorder %s340, 2
        %s346 = scalar_select %p345, %s340, 2
        %s347 = smul.addr %s346, 8
        %s348 = scalar_lea.vmem %s0, %s347
        %s349 = smul.u32 2, %s22
        %s350 = ssub.s32 3, %s349
        %p351 = scmp.lt.s32.totalorder %s350, 2
        %s352 = scalar_select %p351, %s350, 2
        %s353 = smul.u32 8, %s352
        %s354 = smul.u32 2, %s22
        %s355 = ssub.s32 3, %s354
        %p356 = scmp.lt.s32.totalorder %s355, 2
        %s357 = scalar_select %p356, %s355, 2
        %s358 = smul.u32 8, %s357
        %p359 = scmp.lt.s32.totalorder %s354, 2
        %s360 = scalar_select %p359, %s354, 2
        %s361 = smul.addr %s360, 8
        %s362 = scalar_lea.vmem %s1, %s361
        %s363 = smul.u32 2, %s22
        %s364 = ssub.s32 3, %s363
        %p365 = scmp.lt.s32.totalorder %s364, 2
        %s366 = scalar_select %p365, %s364, 2
        %s367 = smul.u32 8, %s366
        %s368 = smul.u32 2, %s22
        %s369 = ssub.s32 3, %s368
        %p370 = scmp.lt.s32.totalorder %s369, 2
        %s371 = scalar_select %p370, %s369, 2
        %s372 = smul.u32 8, %s371
        %v373 = vld [vmem:[%s348] sm:$0xff]
        %v374 = vld [vmem:[%s348 + $0x8] sm:$0xff]
        %v375 = vld [vmem:[%s2] sm:$0xff]
        %v376 = vld [vmem:[%s2 + $0x8] sm:$0xff]
        %v377 = vld [vmem:[%s2 + $0x10] sm:$0xff]
        %v378 = vld [vmem:[%s2 + $0x18] sm:$0xff]
        %v379 = vld [vmem:[%s2 + $0x20] sm:$0xff]
        %v380 = vld [vmem:[%s2 + $0x28] sm:$0xff]
        %v381 = vld [vmem:[%s3] sm:$0x1]
        %v383 = vperm.slane %v381, 0
        %vm385 = vcmask 392192
        %v387 = vsel %vm385, %v373, 0
        %v390 = vsel %vm385, %v374, 0
        %392 = vmatpush.msra.mxu0 0.0
        %393 = vmatpush.msra.mxu0 0.0
        %394 = vmatpush.msra.mxu0 0.0
        %395 = vmatpush.msra.mxu0 0.0
        %396 = vmatpush.msra.mxu0 0.0
        %397 = vmatpush.msra.mxu0 0.0
        %398 = vmatpush.msra.mxu0 0.0
        %399 = vmatpush.msra.mxu0 0.0
        %400 = vmatpush.msra.mxu0 0.0
        %401 = vmatpush.msra.mxu0 0.0
        %402 = vmatpush.msra.mxu0 %v380
        %403 = vmatpush.msra.mxu0 %v379
        %404 = vmatpush.msra.mxu0 %v378
        %405 = vmatpush.msra.mxu0 %v377
        %406 = vmatpush.msra.mxu0 %v376
        %407 = vmatpush.msra.mxu0 %v375
        %408 = vmatmul.f32.gmra.mxu0 %v387
        %v409 = vpop.f32.mrf.mxu0
        %v410 = vadd.f32 %v383, %v409
        %411 = vmatmul.f32.gmra.mxu0 %v390
        %v412 = vpop.f32.mrf.mxu0
        %v413 = vadd.f32 %v383, %v412
        %414 = vdwg.mxu0
        %v415 = vld [vmem:[%s362] sm:$0xff]
        %v416 = vld [vmem:[%s362 + $0x8] sm:$0xff]
        %v417 = vld [vmem:[%s4] sm:$0xff]
        %v418 = vld [vmem:[%s4 + $0x8] sm:$0xff]
        %v419 = vld [vmem:[%s4 + $0x10] sm:$0xff]
        %v420 = vld [vmem:[%s4 + $0x18] sm:$0xff]
        %v421 = vld [vmem:[%s4 + $0x20] sm:$0xff]
        %v422 = vld [vmem:[%s4 + $0x28] sm:$0xff]
        %v423 = vld [vmem:[%s5] sm:$0x1]
        %v425 = vperm.slane %v423, 0
        %v428 = vsel %vm385, %v415, 0
        %v431 = vsel %vm385, %v416, 0
        %433 = vmatpush.msra.mxu0 0.0
        %434 = vmatpush.msra.mxu0 0.0
        %435 = vmatpush.msra.mxu0 0.0
        %436 = vmatpush.msra.mxu0 0.0
        %437 = vmatpush.msra.mxu0 0.0
        %438 = vmatpush.msra.mxu0 0.0
        %439 = vmatpush.msra.mxu0 0.0
        %440 = vmatpush.msra.mxu0 0.0
        %441 = vmatpush.msra.mxu0 0.0
        %442 = vmatpush.msra.mxu0 0.0
        %443 = vmatpush.msra.mxu0 %v422
        %444 = vmatpush.msra.mxu0 %v421
        %445 = vmatpush.msra.mxu0 %v420
        %446 = vmatpush.msra.mxu0 %v419
        %447 = vmatpush.msra.mxu0 %v418
        %448 = vmatpush.msra.mxu0 %v417
        %449 = vmatmul.f32.gmra.mxu0 %v428
        %v450 = vpop.f32.mrf.mxu0
        %v451 = vadd.f32 %v425, %v450
        %452 = vmatmul.f32.gmra.mxu0 %v431
        %v453 = vpop.f32.mrf.mxu0
        %v454 = vadd.f32 %v425, %v453
        %455 = vdwg.mxu0
        %v456 = vmul.f32 %v410, 0.5
        %v457 = vmul.f32 %v413, 0.5
        %v458 = vmul.f32 %v410, 0.70710677
        %v459 = vmul.f32 %v413, 0.70710677
        %v460 = vmul.f32 %v458, %v458
        %v461 = vmin.f32 16.0, %v460
        %v462 = vmul.f32 %v461, 2.1237322e-06
        %v463 = vadd.f32 %v462, 0.00028619796
        %v464 = vmul.f32 %v461, %v463
        %v465 = vadd.f32 %v464, 0.0036580483
        %v466 = vmul.f32 %v461, %v465
        %v467 = vadd.f32 %v466, 0.05243302
        %v468 = vmul.f32 %v461, %v467
        %v469 = vadd.f32 %v468, 0.18741608
        %v470 = vmul.f32 %v461, %v469
        %v471 = vadd.f32 %v470, 1.1283791
        %v472 = vmul.f32 %v458, %v471
        %v473 = vmul.f32 %v461, 3.8918573e-05
        %v474 = vadd.f32 %v473, 0.001143296
        %v475 = vmul.f32 %v461, %v474
        %v476 = vadd.f32 %v475, 0.014752088
        %v477 = vmul.f32 %v461, %v476
        %v478 = vadd.f32 %v477, 0.112945676
        %v479 = vmul.f32 %v461, %v478
        %v480 = vadd.f32 %v479, 0.4994258
        %v481 = vmul.f32 %v461, %v480
        %v482 = vadd.f32 %v481, 1.0
        %v483 = vrcp.pop %v482
        %v484 = vmul.f32 %v482, %v483
        %v485 = vsub.f32 1.0, %v484
        %v486 = vmul.f32 %v483, %v485
        %v487 = vadd.f32 %v483, %v486
        %vm488 = vweird.f32 %v482
        %vm489 = vweird.f32 %v483
        %vm490 = vmor %vm488, %vm489
        %v491 = vsel %vm490, %v483, %v487
        %v492 = vand.u32 2147483647, %v482
        %vm493 = vcmp.eq.f32.partialorder %v492, 8.507059e+37
        %v494 = vand.u32 %v482, 2147483648
        %v495 = vor.u32 1.1754944e-38, %v494
        %v496 = vsel %vm493, %v495, %v491
        %v497 = vmul.f32 %v472, %v496
        %v498 = vmin.f32 %v497, 1.0
        %v499 = vmax.f32 %v498, -1.0
        %v500 = vmul.f32 %v459, %v459
        %v501 = vmin.f32 16.0, %v500
        %v502 = vmul.f32 %v501, 2.1237322e-06
        %v503 = vadd.f32 %v502, 0.00028619796
        %v504 = vmul.f32 %v501, %v503
        %v505 = vadd.f32 %v504, 0.0036580483
        %v506 = vmul.f32 %v501, %v505
        %v507 = vadd.f32 %v506, 0.05243302
        %v508 = vmul.f32 %v501, %v507
        %v509 = vadd.f32 %v508, 0.18741608
        %v510 = vmul.f32 %v501, %v509
        %v511 = vadd.f32 %v510, 1.1283791
        %v512 = vmul.f32 %v459, %v511
        %v513 = vmul.f32 %v501, 3.8918573e-05
        %v514 = vadd.f32 %v513, 0.001143296
        %v515 = vmul.f32 %v501, %v514
        %v516 = vadd.f32 %v515, 0.014752088
        %v517 = vmul.f32 %v501, %v516
        %v518 = vadd.f32 %v517, 0.112945676
        %v519 = vmul.f32 %v501, %v518
        %v520 = vadd.f32 %v519, 0.4994258
        %v521 = vmul.f32 %v501, %v520
        %v522 = vadd.f32 %v521, 1.0
        %v523 = vrcp.pop %v522
        %v524 = vmul.f32 %v522, %v523
        %v525 = vsub.f32 1.0, %v524
        %v526 = vmul.f32 %v523, %v525
        %v527 = vadd.f32 %v523, %v526
        %vm528 = vweird.f32 %v522
        %vm529 = vweird.f32 %v523
        %vm530 = vmor %vm528, %vm529
        %v531 = vsel %vm530, %v523, %v527
        %v532 = vand.u32 2147483647, %v522
        %vm533 = vcmp.eq.f32.partialorder %v532, 8.507059e+37
        %v534 = vand.u32 %v522, 2147483648
        %v535 = vor.u32 1.1754944e-38, %v534
        %v536 = vsel %vm533, %v535, %v531
        %v537 = vmul.f32 %v512, %v536
        %v538 = vmin.f32 %v537, 1.0
        %v539 = vmax.f32 %v538, -1.0
        %v540 = vadd.f32 %v499, 1.0
        %v541 = vadd.f32 %v539, 1.0
        %v542 = vmul.f32 %v456, %v540
        %v543 = vmul.f32 %v457, %v541
        %v544 = vmul.f32 %v451, 0.5
        %v545 = vmul.f32 %v454, 0.5
        %v546 = vmul.f32 %v451, 0.70710677
        %v547 = vmul.f32 %v454, 0.70710677
        %v548 = vmul.f32 %v546, %v546
        %v549 = vmin.f32 16.0, %v548
        %v550 = vmul.f32 %v549, 2.1237322e-06
        %v551 = vadd.f32 %v550, 0.00028619796
        %v552 = vmul.f32 %v549, %v551
        %v553 = vadd.f32 %v552, 0.0036580483
        %v554 = vmul.f32 %v549, %v553
        %v555 = vadd.f32 %v554, 0.05243302
        %v556 = vmul.f32 %v549, %v555
        %v557 = vadd.f32 %v556, 0.18741608
        %v558 = vmul.f32 %v549, %v557
        %v559 = vadd.f32 %v558, 1.1283791
        %v560 = vmul.f32 %v546, %v559
        %v561 = vmul.f32 %v549, 3.8918573e-05
        %v562 = vadd.f32 %v561, 0.001143296
        %v563 = vmul.f32 %v549, %v562
        %v564 = vadd.f32 %v563, 0.014752088
        %v565 = vmul.f32 %v549, %v564
        %v566 = vadd.f32 %v565, 0.112945676
        %v567 = vmul.f32 %v549, %v566
        %v568 = vadd.f32 %v567, 0.4994258
        %v569 = vmul.f32 %v549, %v568
        %v570 = vadd.f32 %v569, 1.0
        %v571 = vrcp.pop %v570
        %v572 = vmul.f32 %v570, %v571
        %v573 = vsub.f32 1.0, %v572
        %v574 = vmul.f32 %v571, %v573
        %v575 = vadd.f32 %v571, %v574
        %vm576 = vweird.f32 %v570
        %vm577 = vweird.f32 %v571
        %vm578 = vmor %vm576, %vm577
        %v579 = vsel %vm578, %v571, %v575
        %v580 = vand.u32 2147483647, %v570
        %vm581 = vcmp.eq.f32.partialorder %v580, 8.507059e+37
        %v582 = vand.u32 %v570, 2147483648
        %v583 = vor.u32 1.1754944e-38, %v582
        %v584 = vsel %vm581, %v583, %v579
        %v585 = vmul.f32 %v560, %v584
        %v586 = vmin.f32 %v585, 1.0
        %v587 = vmax.f32 %v586, -1.0
        %v588 = vmul.f32 %v547, %v547
        %v589 = vmin.f32 16.0, %v588
        %v590 = vmul.f32 %v589, 2.1237322e-06
        %v591 = vadd.f32 %v590, 0.00028619796
        %v592 = vmul.f32 %v589, %v591
        %v593 = vadd.f32 %v592, 0.0036580483
        %v594 = vmul.f32 %v589, %v593
        %v595 = vadd.f32 %v594, 0.05243302
        %v596 = vmul.f32 %v589, %v595
        %v597 = vadd.f32 %v596, 0.18741608
        %v598 = vmul.f32 %v589, %v597
        %v599 = vadd.f32 %v598, 1.1283791
        %v600 = vmul.f32 %v547, %v599
        %v601 = vmul.f32 %v589, 3.8918573e-05
        %v602 = vadd.f32 %v601, 0.001143296
        %v603 = vmul.f32 %v589, %v602
        %v604 = vadd.f32 %v603, 0.014752088
        %v605 = vmul.f32 %v589, %v604
        %v606 = vadd.f32 %v605, 0.112945676
        %v607 = vmul.f32 %v589, %v606
        %v608 = vadd.f32 %v607, 0.4994258
        %v609 = vmul.f32 %v589, %v608
        %v610 = vadd.f32 %v609, 1.0
        %v611 = vrcp.pop %v610
        %v612 = vmul.f32 %v610, %v611
        %v613 = vsub.f32 1.0, %v612
        %v614 = vmul.f32 %v611, %v613
        %v615 = vadd.f32 %v611, %v614
        %vm616 = vweird.f32 %v610
        %vm617 = vweird.f32 %v611
        %vm618 = vmor %vm616, %vm617
        %v619 = vsel %vm618, %v611, %v615
        %v620 = vand.u32 2147483647, %v610
        %vm621 = vcmp.eq.f32.partialorder %v620, 8.507059e+37
        %v622 = vand.u32 %v610, 2147483648
        %v623 = vor.u32 1.1754944e-38, %v622
        %v624 = vsel %vm621, %v623, %v619
        %v625 = vmul.f32 %v600, %v624
        %v626 = vmin.f32 %v625, 1.0
        %v627 = vmax.f32 %v626, -1.0
        %v628 = vadd.f32 %v587, 1.0
        %v629 = vadd.f32 %v627, 1.0
        %v630 = vmul.f32 %v544, %v628
        %v631 = vmul.f32 %v545, %v629
        %v632 = vmul.f32 %v542, %v630
        %v633 = vmul.f32 %v543, %v631
        %vm634 = vcmask 130048
        %v635 = vsel %vm634, %v542, 0.0
        %636 = vadd.xlane.f32.xlu0 %v635
        %v637 = vpop.xlane.xlu0 %636
        %v638 = vsel %vm634, %v543, 0.0
        %639 = vadd.xlane.f32.xlu0 %v638
        %v640 = vpop.xlane.xlu0 %639
        %v641 = vsel %vm634, %v630, 0.0
        %642 = vadd.xlane.f32.xlu0 %v641
        %v643 = vpop.xlane.xlu0 %642
        %v644 = vsel %vm634, %v631, 0.0
        %645 = vadd.xlane.f32.xlu0 %v644
        %v646 = vpop.xlane.xlu0 %645
        %v647 = vadd.f32 %v637, %v643
        %v648 = vadd.f32 %v640, %v646
        %v649 = vsel %vm634, %v632, 0.0
        %650 = vadd.xlane.f32.xlu0 %v649
        %v651 = vpop.xlane.xlu0 %650
        %v652 = vsel %vm634, %v633, 0.0
        %653 = vadd.xlane.f32.xlu0 %v652
        %v654 = vpop.xlane.xlu0 %653
        %v655 = vadd.f32 %v647, %v651
        %v656 = vadd.f32 %v648, %v654
        %v657 = vmul.f32 %v542, %v542
        %v658 = vmul.f32 %v543, %v543
        %v659 = vsel %vm634, %v657, 0.0
        %660 = vadd.xlane.f32.xlu0 %v659
        %v661 = vpop.xlane.xlu0 %660
        %v662 = vsel %vm634, %v658, 0.0
        %663 = vadd.xlane.f32.xlu0 %v662
        %v664 = vpop.xlane.xlu0 %663
        %v665 = vmul.f32 %v630, %v630
        %v666 = vmul.f32 %v631, %v631
        %v667 = vsel %vm634, %v665, 0.0
        %668 = vadd.xlane.f32.xlu0 %v667
        %v669 = vpop.xlane.xlu0 %668
        %v670 = vsel %vm634, %v666, 0.0
        %671 = vadd.xlane.f32.xlu0 %v670
        %v672 = vpop.xlane.xlu0 %671
        %v673 = vadd.f32 %v661, %v669
        %v674 = vadd.f32 %v664, %v672
        %v675 = vmul.f32 %v632, %v632
        %v676 = vmul.f32 %v633, %v633
        %v677 = vsel %vm634, %v675, 0.0
        %678 = vadd.xlane.f32.xlu0 %v677
        %v679 = vpop.xlane.xlu0 %678
        %v680 = vsel %vm634, %v676, 0.0
        %681 = vadd.xlane.f32.xlu0 %v680
        %v682 = vpop.xlane.xlu0 %681
        %v683 = vadd.f32 %v673, %v679
        %v684 = vadd.f32 %v674, %v682
        %v685 = vmul.f32 %v655, 0.020833334
        %v686 = vmul.f32 %v656, 0.020833334
        %v687 = vmul.f32 %v683, 0.020833334
        %v688 = vmul.f32 %v684, 0.020833334
        %v689 = vmul.f32 %v685, %v685
        %v690 = vmul.f32 %v686, %v686
        %v691 = vsub.f32 %v687, %v689
        %v692 = vsub.f32 %v688, %v690
        %v693 = vmax.f32 %v691, 0.0
        %v694 = vmax.f32 %v692, 0.0
        %v695 = vadd.f32 %v693, 1e-12
        %v696 = vadd.f32 %v694, 1e-12
        %v697 = vrsqrt.pop %v695
        %v698 = vmul.f32 %v697, %v695
        %v699 = vmul.f32 %v698, %v697
        %v700 = vmul.f32 0.5, %v699
        %v701 = vsub.f32 1.5, %v700
        %v702 = vmul.f32 %v697, %v701
        %vm703 = vweird.f32 %v695
        %vm704 = vweird.f32 %v697
        %vm705 = vmor %vm703, %vm704
        %v706 = vsel %vm705, %v697, %v702
        %v707 = vrsqrt.pop %v696
        %v708 = vmul.f32 %v707, %v696
        %v709 = vmul.f32 %v708, %v707
        %v710 = vmul.f32 0.5, %v709
        %v711 = vsub.f32 1.5, %v710
        %v712 = vmul.f32 %v707, %v711
        %vm713 = vweird.f32 %v696
        %vm714 = vweird.f32 %v707
        %vm715 = vmor %vm713, %vm714
        %v716 = vsel %vm715, %v707, %v712
        %v717 = vld [vmem:[%s6] sm:$0x1]
        %v718 = vld [vmem:[%s7] sm:$0x1]
        %v720 = vperm.slane %v717, 0
        %v722 = vmul.f32 %v706, %v720
        %v723 = vmul.f32 %v716, %v720
        %v724 = vmul.f32 %v685, %v722
        %v725 = vmul.f32 %v686, %v723
        %v727 = vperm.slane %v718, 0
        %v729 = vsub.f32 %v727, %v724
        %v730 = vsub.f32 %v727, %v725
        %v731 = vmul.f32 %v542, %v722
        %v732 = vmul.f32 %v543, %v723
        %v733 = vadd.f32 %v731, %v729
        %v734 = vadd.f32 %v732, %v730
        %735 = vst.msk [vmem:[%s339] sm:$0xff] %vm634, %v733
        %736 = vst.msk [vmem:[%s339 + $0x8] sm:$0xff] %vm634, %v734
        %739 = vrot.lane.b32.xlu0 %v722, 112
        %v740 = vpop.permute.xlu0 %739
        %741 = vrot.lane.b32.xlu0 %v723, 112
        %v742 = vpop.permute.xlu0 %741
        %v745 = vmul.f32 %v630, %v740
        %v746 = vmul.f32 %v631, %v742
        %749 = vrot.lane.b32.xlu0 %v729, 112
        %v750 = vpop.permute.xlu0 %749
        %751 = vrot.lane.b32.xlu0 %v730, 112
        %v752 = vpop.permute.xlu0 %751
        %v755 = vadd.f32 %v745, %v750
        %v756 = vadd.f32 %v746, %v752
        %759 = vrot.lane.b32.xlu0 %v755, 16
        %v760 = vpop.permute.xlu0 %759
        %761 = vrot.lane.b32.xlu0 %v756, 16
        %v762 = vpop.permute.xlu0 %761
        %vm765 = vcmask 261248
        %766 = vst.msk [vmem:[%s339] sm:$0xff] %vm765, %v760
        %767 = vst.msk [vmem:[%s339 + $0x8] sm:$0xff] %vm765, %v762
        %768 = vrot.lane.b32.xlu0 %v722, 96
        %v769 = vpop.permute.xlu0 %768
        %770 = vrot.lane.b32.xlu0 %v723, 96
        %v771 = vpop.permute.xlu0 %770
        %v774 = vmul.f32 %v632, %v769
        %v775 = vmul.f32 %v633, %v771
        %776 = vrot.lane.b32.xlu0 %v729, 96
        %v777 = vpop.permute.xlu0 %776
        %778 = vrot.lane.b32.xlu0 %v730, 96
        %v779 = vpop.permute.xlu0 %778
        %v782 = vadd.f32 %v774, %v777
        %v783 = vadd.f32 %v775, %v779
        %786 = vrot.lane.b32.xlu0 %v782, 32
        %v787 = vpop.permute.xlu0 %786
        %788 = vrot.lane.b32.xlu0 %v783, 32
        %v789 = vpop.permute.xlu0 %788
        %vm792 = vcmask 392448
        %793 = vst.msk [vmem:[%s339] sm:$0xff] %vm792, %v787
        %794 = vst.msk [vmem:[%s339 + $0x8] sm:$0xff] %vm792, %v789
        %s795 = sand.u32 %s208, 1
        %s796 = scalar_lea.sflag [#allocation3], %s795
        %s797 = sand.u32 %s208, 1
        %s798 = smul.addr %s797, 16
        %s799 = scalar_lea.vmem [#allocation2], %s798
        // Predicated region
        $region53: #{tpu_custom_call.1} parent=51 // pred_check
          %p800 = pneg %p218
        $region54: #{tpu_custom_call.1} parent=51 // pred_check_branch
          %802 = sbr.rel (%p800) target = $region56
        $region55: #{tpu_custom_call.1} parent=51 // pred_region
          %s803 = smul.u32 2, %s22
          %s804 = ssub.s32 3, %s803
          %p805 = scmp.lt.s32.totalorder %s804, 2
          %s806 = scalar_select %p805, %s804, 2
          %s807 = smul.u32 8, %s806
          %s808 = ssub.s32 16, %s807
          %s809 = sshll.u32 %s808, 4
          %810 = vsyncadd %s796, %s809
          %p811 = scmp.ne.s32.totalorder 0, %s807
          %s812 = smul.addr %s803, 8
          %s813 = scalar_lea.hbm %s8, %s812
          %s814 = smul.u32 8, %s806
          %s815 = sshll.u32 %s799, 4
          %s816 = int_to_ptr.vmem [resolvable:$true] %s815
          %s817 = sshll.u32 %s813, 4
          %s818 = int_to_ptr.hbm [resolvable:$true] %s817
          %s819 = sshll.u32 %s814, 4
          %823 = dma.vmem_to_hbm [thread:$0]  (%p811), %s816, %s819, %s818, %s796, 128, 128, 8
        $region56: #{tpu_custom_call.1} parent=51 // pred_fallthru
          _
      $region52: #{tpu_custom_call.1} parent=5 // pred_fallthru
        _
      %p824 = scmp.le.s32.totalorder 2, %s17
      // Predicated region
      $region57: #{tpu_custom_call.1} parent=5 // pred_check
        %p825 = pneg %p824
      $region58: #{tpu_custom_call.1} parent=5 // pred_check_branch
        %827 = sbr.rel (%p825) target = $region60
      $region59: #{tpu_custom_call.1} parent=5 // pred_region
        %s828 = ssub.s32 %s17, 2
        // Predicated region
        $region61: #{tpu_custom_call.1} parent=59 // pred_check
          %p829 = pneg %p224
        $region62: #{tpu_custom_call.1} parent=59 // pred_check_branch
          %831 = sbr.rel (%p829) target = $region64
        $region63: #{tpu_custom_call.1} parent=59 // pred_region
          %s832 = sand.u32 %s209, 1
          %s833 = scalar_lea.sflag [#allocation3], %s832
          %s834 = sand.u32 %s209, 1
          %s835 = smul.addr %s834, 16
          %s836 = scalar_lea.vmem [#allocation2], %s835
          %838 = dma.done %s833, 256
        $region64: #{tpu_custom_call.1} parent=59 // pred_fallthru
          _
      $region60: #{tpu_custom_call.1} parent=5 // pred_fallthru
        _
    $region6: #{tpu_custom_call.1} parent=1 // loop_footer
      %s21 = sadd.s32 1, %s17
    $region7: #{tpu_custom_call.1} parent=1 // loop_footer_branch
      %16 = sbr.rel target = $region3
    $region8: #{tpu_custom_call.1} parent=1 // loop_exit
      _
    %839 = vsyncpa [#allocation3], 1
    %s840 = scalar_lea.sflag [#allocation3], 1
    %841 = vsyncpa %s840, 1

</llo_original>
